<compile_context>
chip_gen: v7x
topology: tpu7x:2x2x1
jax: 0.10.0
libtpu: 0.0.40
codegen_flags: <defaults>
</compile_context>

<pallas_src>
import functools

import numpy as np
import jax
import jax.numpy as jnp
from jax.experimental import pallas as pl
from jax.experimental.pallas import tpu as pltpu

LANES = 128
MOMENTS = (0.5, 1.0, 2.0)          # MomentsOp default [1/2, 1, 2]
M = len(MOMENTS)


def _vmem_budget():
    """Pick (row_tile_target, vmem_limit_bytes) from physical VMEM capacity."""
    cap = None
    try:
        info = pltpu.get_tpu_info()
        cap = getattr(info, "vmem_capacity_bytes", None)
    except Exception:
        cap = None
    if cap is None:
        cap = 64 * 1024 * 1024                      # conservative (v7x-safe)
    if cap >= 96 * 1024 * 1024:                     # v5e / v6e: 128 MiB physical
        return 8192, 96 * 1024 * 1024
    return 4096, 48 * 1024 * 1024                   # v7x: 64 MiB physical


ROW_TILE_TARGET, VMEM_LIMIT_BYTES = _vmem_budget()


def _row_tile(rows, target):
    """Row-tile size: <= target, always a multiple of 16 (bf16-native tiling)."""
    tr = min(target, rows)
    tr = ((tr + 15) // 16) * 16
    return max(tr, 16)


def _pad_rows(arr, rows_pad, axis):
    """Zero-pad the row axis up to rows_pad (zeros are moment-neutral)."""
    rows = arr.shape[axis]
    if rows == rows_pad:
        return arr
    pad = [(0, 0)] * arr.ndim
    pad[axis] = (0, rows_pad - rows)
    return jnp.pad(arr, pad)


# ----------------------------------------------------------------------------
# Pallas kernels: streaming lane-wise moment accumulators
# ----------------------------------------------------------------------------

def _s0_kernel(x_ref, out_ref):
    """Moments of |x| for one row tile, accumulated across the row axis.

    x_ref:   (TR, 128)    f32 tile of the flattened field.
    out_ref: (1, M, 128)  f32 running lane-wise sums for this parallel segment.
    """
    @pl.when(pl.program_id(1) == 0)
    def _():
        out_ref[...] = jnp.zeros_like(out_ref)

    x = x_ref[...]
    ax = jnp.abs(x)
    out_ref[0, 0, :] += jnp.sum(jnp.sqrt(ax), axis=0)    # p = 1/2
    out_ref[0, 1, :] += jnp.sum(ax, axis=0)              # p = 1
    out_ref[0, 2, :] += jnp.sum(x * x, axis=0)           # p = 2 (no abs needed)


def _s1_kernel(re_ref, im_ref, out_ref):
    """Moments of |x*psi| for one channel, accumulated over row tiles.

    re_ref/im_ref: (1, TR, 128)  bf16 tiles of this channel's wavelet coeffs.
    out_ref:       (1, M, 128)   f32 running lane-wise sums for this channel.
    """
    @pl.when(pl.program_id(1) == 0)
    def _():
        out_ref[...] = jnp.zeros_like(out_ref)

    re = re_ref[0].astype(jnp.float32)
    im = im_ref[0].astype(jnp.float32)
    mod2 = re * re + im * im                  # |w|^2   -> p = 2 directly
    m1 = jnp.sqrt(mod2)                       # |w|     -> p = 1
    m05 = jnp.sqrt(m1)                        # |w|^1/2 -> p = 1/2
    out_ref[0, 0, :] += jnp.sum(m05, axis=0)
    out_ref[0, 1, :] += jnp.sum(m1, axis=0)
    out_ref[0, 2, :] += jnp.sum(mod2, axis=0)


# ----------------------------------------------------------------------------
# Deterministic oriented wavelet bank (Fourier domain), stand-in for
# WaveletTransform3D's filters.
# ----------------------------------------------------------------------------

def build_wavelet_bank(grid_size, J, Q, L, kc=np.pi, angular_width=1.0,
                       grid_steps=(1.0, 1.0, 1.0)):
    Nx, Ny, Nz = grid_size
    kx = 2.0 * np.pi * np.fft.fftfreq(Nx, d=grid_steps[0])
    ky = 2.0 * np.pi * np.fft.fftfreq(Ny, d=grid_steps[1])
    kz = 2.0 * np.pi * np.fft.fftfreq(Nz, d=grid_steps[2])
    KX, KY, KZ = np.meshgrid(kx, ky, kz, indexing="ij")
    kmod = np.sqrt(KX ** 2 + KY ** 2 + KZ ** 2)

    Jeff = J * Q
    thetas = np.arange(L) * np.pi / max(L, 1)
    orientations = [(np.sin(t), 0.0, np.cos(t)) for t in thetas]

    bank = np.zeros((Jeff, L, Nx, Ny, Nz), dtype=np.float32)
    eps = 1e-12
    for jq in range(Jeff):
        scale = 2.0 ** (jq / Q)
        ks = kmod * scale
        radial = (ks / kc) ** 2 * np.exp(-0.5 * (ks / kc) ** 2)
        for l, u in enumerate(orientations):
            cos_ang = (KX * u[0] + KY * u[1] + KZ * u[2]) / np.maximum(kmod, eps)
            ang = np.exp(-0.5 * ((1.0 - cos_ang) / angular_width) ** 2)
            bank[jq, l] = (radial * ang).astype(np.float32)
    return jnp.asarray(bank.reshape(Jeff * L, Nx, Ny, Nz))


# ----------------------------------------------------------------------------
# ScatteringOp.forward  (scattering=False)
# ----------------------------------------------------------------------------

@functools.partial(jax.jit, static_argnums=(2, 3))
def scattering_op(x, psi_hat, Jeff, L):
    Nx, Ny, Nz = x.shape
    S = Nx * Ny * Nz
    assert S % LANES == 0, "field size must be a multiple of 128"
    rows = S // LANES
    C = psi_hat.shape[0]
    assert C == Jeff * L

    TR = _row_tile(rows, ROW_TILE_TARGET)
    rows_pad = ((rows + TR - 1) // TR) * TR
    R = rows_pad // TR

    x = x.astype(jnp.float32)
    x_flat = _pad_rows(x.reshape(rows, LANES), rows_pad, axis=0)

    # ---- S0 = <|x|^p> : streaming row-tiled accumulation ---------------------
    # Two parallel segments (when R is even) so v7x's two TensorCores both get
    # a partial accumulator; partials summed in XLA.  Neutral on v5e/v6e.
    nseg = 2 if (R >= 2 and R % 2 == 0) else 1
    rseg = R // nseg
    s0_part = pl.pallas_call(
        _s0_kernel,
        grid=(nseg, rseg),
        in_specs=[pl.BlockSpec((TR, LANES), lambda p, r: (p * rseg + r, 0))],
        out_specs=pl.BlockSpec((1, M, LANES), lambda p, r: (p, 0, 0)),
        out_shape=jax.ShapeDtypeStruct((nseg, M, LANES), jnp.float32),
        compiler_params=pltpu.CompilerParams(
            dimension_semantics=("parallel", "arbitrary"),
            vmem_limit_bytes=VMEM_LIMIT_BYTES),
    )(x_flat)
    s0 = s0_part.sum(axis=(0, 2)) / S                  # (M,)

    # ---- Wavelet transform: all in XLA (FFT -> fused complex*real -> IFFT) ---
    # TODO(synk): fftn/ifftn and complex arithmetic have no Pallas TPU
    #             primitive; the Fourier-domain multiply is left to XLA so the
    #             IFFT consumes it directly with no split/recombine passes.
    x_fft = jnp.fft.fftn(x)                            # complex64, (Nx,Ny,Nz)
    wtx_fft = x_fft[None, ...] * psi_hat               # complex64 * f32, fused
    wtx = jnp.fft.ifftn(wtx_fft, axes=(-3, -2, -1))    # (C,Nx,Ny,Nz) complex64

    # bf16 downcast fused into the real/imag split: halves the split's write
    # traffic and the S1 read stream; accumulation stays f32 in the kernel.
    wre = jnp.real(wtx).astype(jnp.bfloat16).reshape(C, rows, LANES)
    wim = jnp.imag(wtx).astype(jnp.bfloat16).reshape(C, rows, LANES)
    wre = _pad_rows(wre, rows_pad, axis=1)
    wim = _pad_rows(wim, rows_pad, axis=1)

    # ---- S1 = <|x*psi|^p> : per-channel streaming accumulation ---------------
    s1_part = pl.pallas_call(
        _s1_kernel,
        grid=(C, R),                                   # reduction (row) axis last
        in_specs=[
            pl.BlockSpec((1, TR, LANES), lambda c, r: (c, r, 0)),
            pl.BlockSpec((1, TR, LANES), lambda c, r: (c, r, 0)),
        ],
        out_specs=pl.BlockSpec((1, M, LANES), lambda c, r: (c, 0, 0)),
        out_shape=jax.ShapeDtypeStruct((C, M, LANES), jnp.float32),
        compiler_params=pltpu.CompilerParams(
            dimension_semantics=("parallel", "arbitrary"),
            vmem_limit_bytes=VMEM_LIMIT_BYTES),
    )(wre, wim)
    s1 = s1_part.sum(axis=-1) / S                      # (C, M)
    s1 = s1.T.reshape(M, Jeff, L)                      # match torch (M, Jeff, L)

    return s0, s1


if __name__ == "__main__":
    key = jax.random.PRNGKey(0)
    N = 16
    grid_size = (N, N, N)
    J, Q, L = 2, 1, 2
    Jeff = J * Q

    x = jax.random.normal(key, grid_size, dtype=jnp.float32)
    psi_hat = build_wavelet_bank(grid_size, J, Q, L,
                                 kc=np.pi, angular_width=1.0)

    s0, s1 = scattering_op(x, psi_hat, Jeff, L)
    jax.block_until_ready((s0, s1))

    assert s0.shape == (M,)
    assert s1.shape == (M, Jeff, L)
    assert bool(jnp.all(jnp.isfinite(s0))) and bool(jnp.all(jnp.isfinite(s1)))
    print("KERNEL_OK")
</pallas_src>

<mosaic_0001>
module attributes {stable_mosaic.version = 11 : i64} {
  func.func @_s1_kernel(%arg0: i32, %arg1: i32, %arg2: memref<1x32x128xbf16, #tpu.memory_space<vmem>>, %arg3: memref<1x32x128xbf16, #tpu.memory_space<vmem>>, %arg4: memref<1x3x128xf32, #tpu.memory_space<vmem>>) attributes {dimension_semantics = [#tpu.dimension_semantics<parallel>, #tpu.dimension_semantics<arbitrary>], iteration_bounds = array<i64: 4, 1>, scalar_prefetch = 0 : i64, scratch_operands = 0 : i64, tpu.core_type = #tpu.core_type<tc>, window_params = [{transform_indices = @transform_0, window_bounds = array<i64: 1, 32, 128>}, {transform_indices = @transform_1, window_bounds = array<i64: 1, 32, 128>}, {transform_indices = @transform_2, window_bounds = array<i64: 1, 3, 128>}]} {
    %c0_i32 = arith.constant 0 : i32
    %0 = arith.cmpi eq, %arg1, %c0_i32 : i32
    %1 = arith.extui %0 : i1 to i32
    %c0_i32_0 = arith.constant 0 : i32
    %2 = arith.cmpi ne, %1, %c0_i32_0 : i32
    scf.if %2 {
      %cst_24 = arith.constant 0.000000e+00 : f32
      %35 = vector.broadcast %cst_24 : f32 to vector<1x3x128xf32>
      %c0_25 = arith.constant 0 : index
      %c0_26 = arith.constant 0 : index
      %c0_27 = arith.constant 0 : index
      %36 = vector.load %arg4[%c0_25, %c0_26, %c0_27] : memref<1x3x128xf32, #tpu.memory_space<vmem>>, vector<1x3x128xf32>
      tpu.vector_store %arg4[%c0_25, %c0_26, %c0_27], %35 {strides = array<i32>} : memref<1x3x128xf32, #tpu.memory_space<vmem>>, vector<1x3x128xf32>,
    } else {
    }
    %c0 = arith.constant 0 : index
    %c0_1 = arith.constant 0 : index
    %c0_2 = arith.constant 0 : index
    %3 = vector.load %arg2[%c0, %c0_1, %c0_2] : memref<1x32x128xbf16, #tpu.memory_space<vmem>>, vector<1x32x128xbf16>
    %4 = vector.shape_cast %3 : vector<1x32x128xbf16> to vector<32x128xbf16>
    %5 = arith.extf %4 : vector<32x128xbf16> to vector<32x128xf32>
    %c0_3 = arith.constant 0 : index
    %c0_4 = arith.constant 0 : index
    %c0_5 = arith.constant 0 : index
    %6 = vector.load %arg3[%c0_3, %c0_4, %c0_5] : memref<1x32x128xbf16, #tpu.memory_space<vmem>>, vector<1x32x128xbf16>
    %7 = vector.shape_cast %6 : vector<1x32x128xbf16> to vector<32x128xbf16>
    %8 = arith.extf %7 : vector<32x128xbf16> to vector<32x128xf32>
    %9 = arith.mulf %5, %5 : vector<32x128xf32>
    %10 = arith.mulf %8, %8 : vector<32x128xf32>
    %11 = arith.addf %9, %10 : vector<32x128xf32>
    %12 = math.sqrt %11 : vector<32x128xf32>
    %13 = math.sqrt %12 : vector<32x128xf32>
    %c0_6 = arith.constant 0 : index
    %c0_7 = arith.constant 0 : index
    %c0_8 = arith.constant 0 : index
    %14 = vector.load %arg4[%c0_6, %c0_7, %c0_8] : memref<1x3x128xf32, #tpu.memory_space<vmem>>, vector<1x1x128xf32>
    %15 = vector.shape_cast %14 : vector<1x1x128xf32> to vector<128xf32>
    %cst = arith.constant dense<0.000000e+00> : vector<128xf32>
    %16 = vector.multi_reduction <add>, %13, %cst [0] : vector<32x128xf32> to vector<128xf32>
    %17 = arith.addf %15, %16 : vector<128xf32>
    %c0_9 = arith.constant 0 : index
    %c0_10 = arith.constant 0 : index
    %c0_11 = arith.constant 0 : index
    %18 = vector.load %arg4[%c0_9, %c0_10, %c0_11] : memref<1x3x128xf32, #tpu.memory_space<vmem>>, vector<1x1x128xf32>
    %19 = vector.shape_cast %18 : vector<1x1x128xf32> to vector<128xf32>
    %20 = vector.shape_cast %17 : vector<128xf32> to vector<1x1x128xf32>
    tpu.vector_store %arg4[%c0_9, %c0_10, %c0_11], %20 {strides = array<i32>} : memref<1x3x128xf32, #tpu.memory_space<vmem>>, vector<1x1x128xf32>,
    %c0_12 = arith.constant 0 : index
    %c1 = arith.constant 1 : index
    %c0_13 = arith.constant 0 : index
    %21 = vector.load %arg4[%c0_12, %c1, %c0_13] : memref<1x3x128xf32, #tpu.memory_space<vmem>>, vector<1x1x128xf32>
    %22 = vector.shape_cast %21 : vector<1x1x128xf32> to vector<128xf32>
    %cst_14 = arith.constant dense<0.000000e+00> : vector<128xf32>
    %23 = vector.multi_reduction <add>, %12, %cst_14 [0] : vector<32x128xf32> to vector<128xf32>
    %24 = arith.addf %22, %23 : vector<128xf32>
    %c0_15 = arith.constant 0 : index
    %c1_16 = arith.constant 1 : index
    %c0_17 = arith.constant 0 : index
    %25 = vector.load %arg4[%c0_15, %c1_16, %c0_17] : memref<1x3x128xf32, #tpu.memory_space<vmem>>, vector<1x1x128xf32>
    %26 = vector.shape_cast %25 : vector<1x1x128xf32> to vector<128xf32>
    %27 = vector.shape_cast %24 : vector<128xf32> to vector<1x1x128xf32>
    tpu.vector_store %arg4[%c0_15, %c1_16, %c0_17], %27 {strides = array<i32>} : memref<1x3x128xf32, #tpu.memory_space<vmem>>, vector<1x1x128xf32>,
    %c0_18 = arith.constant 0 : index
    %c2 = arith.constant 2 : index
    %c0_19 = arith.constant 0 : index
    %28 = vector.load %arg4[%c0_18, %c2, %c0_19] : memref<1x3x128xf32, #tpu.memory_space<vmem>>, vector<1x1x128xf32>
    %29 = vector.shape_cast %28 : vector<1x1x128xf32> to vector<128xf32>
    %cst_20 = arith.constant dense<0.000000e+00> : vector<128xf32>
    %30 = vector.multi_reduction <add>, %11, %cst_20 [0] : vector<32x128xf32> to vector<128xf32>
    %31 = arith.addf %29, %30 : vector<128xf32>
    %c0_21 = arith.constant 0 : index
    %c2_22 = arith.constant 2 : index
    %c0_23 = arith.constant 0 : index
    %32 = vector.load %arg4[%c0_21, %c2_22, %c0_23] : memref<1x3x128xf32, #tpu.memory_space<vmem>>, vector<1x1x128xf32>
    %33 = vector.shape_cast %32 : vector<1x1x128xf32> to vector<128xf32>
    %34 = vector.shape_cast %31 : vector<128xf32> to vector<1x1x128xf32>
    tpu.vector_store %arg4[%c0_21, %c2_22, %c0_23], %34 {strides = array<i32>} : memref<1x3x128xf32, #tpu.memory_space<vmem>>, vector<1x1x128xf32>,
    return
  }
  func.func @transform_0(%arg0: i32, %arg1: i32) -> (i32, i32, i32) {
    %c0_i32 = arith.constant 0 : i32
    %c0_i32_0 = arith.constant 0 : i32
    return %arg0, %arg1, %c0_i32 : i32, i32, i32
  }
  func.func @transform_1(%arg0: i32, %arg1: i32) -> (i32, i32, i32) {
    %c0_i32 = arith.constant 0 : i32
    %c0_i32_0 = arith.constant 0 : i32
    return %arg0, %arg1, %c0_i32 : i32, i32, i32
  }
  func.func @transform_2(%arg0: i32, %arg1: i32) -> (i32, i32, i32) {
    %c0_i32 = arith.constant 0 : i32
    %c0_i32_0 = arith.constant 0 : i32
    %c0_i32_1 = arith.constant 0 : i32
    return %arg0, %c0_i32, %c0_i32_0 : i32, i32, i32
  }
}

module attributes {stable_mosaic.version = 11 : i64} {
  func.func @_s0_kernel(%arg0: i32, %arg1: i32, %arg2: memref<32x128xf32, #tpu.memory_space<vmem>>, %arg3: memref<1x3x128xf32, #tpu.memory_space<vmem>>) attributes {dimension_semantics = [#tpu.dimension_semantics<parallel>, #tpu.dimension_semantics<arbitrary>], iteration_bounds = array<i64: 1, 1>, scalar_prefetch = 0 : i64, scratch_operands = 0 : i64, tpu.core_type = #tpu.core_type<tc>, window_params = [{transform_indices = @transform_0, window_bounds = array<i64: 32, 128>}, {transform_indices = @transform_1, window_bounds = array<i64: 1, 3, 128>}]} {
    %c0_i32 = arith.constant 0 : i32
    %0 = arith.cmpi eq, %arg1, %c0_i32 : i32
    %1 = arith.extui %0 : i1 to i32
    %c0_i32_0 = arith.constant 0 : i32
    %2 = arith.cmpi ne, %1, %c0_i32_0 : i32
    scf.if %2 {
      %cst_20 = arith.constant 0.000000e+00 : f32
      %28 = vector.broadcast %cst_20 : f32 to vector<1x3x128xf32>
      %c0_21 = arith.constant 0 : index
      %c0_22 = arith.constant 0 : index
      %c0_23 = arith.constant 0 : index
      %29 = vector.load %arg3[%c0_21, %c0_22, %c0_23] : memref<1x3x128xf32, #tpu.memory_space<vmem>>, vector<1x3x128xf32>
      tpu.vector_store %arg3[%c0_21, %c0_22, %c0_23], %28 {strides = array<i32>} : memref<1x3x128xf32, #tpu.memory_space<vmem>>, vector<1x3x128xf32>,
    } else {
    }
    %c0 = arith.constant 0 : index
    %c0_1 = arith.constant 0 : index
    %3 = vector.load %arg2[%c0, %c0_1] : memref<32x128xf32, #tpu.memory_space<vmem>>, vector<32x128xf32>
    %4 = math.absf %3 : vector<32x128xf32>
    %c0_2 = arith.constant 0 : index
    %c0_3 = arith.constant 0 : index
    %c0_4 = arith.constant 0 : index
    %5 = vector.load %arg3[%c0_2, %c0_3, %c0_4] : memref<1x3x128xf32, #tpu.memory_space<vmem>>, vector<1x1x128xf32>
    %6 = vector.shape_cast %5 : vector<1x1x128xf32> to vector<128xf32>
    %7 = math.sqrt %4 : vector<32x128xf32>
    %cst = arith.constant dense<0.000000e+00> : vector<128xf32>
    %8 = vector.multi_reduction <add>, %7, %cst [0] : vector<32x128xf32> to vector<128xf32>
    %9 = arith.addf %6, %8 : vector<128xf32>
    %c0_5 = arith.constant 0 : index
    %c0_6 = arith.constant 0 : index
    %c0_7 = arith.constant 0 : index
    %10 = vector.load %arg3[%c0_5, %c0_6, %c0_7] : memref<1x3x128xf32, #tpu.memory_space<vmem>>, vector<1x1x128xf32>
    %11 = vector.shape_cast %10 : vector<1x1x128xf32> to vector<128xf32>
    %12 = vector.shape_cast %9 : vector<128xf32> to vector<1x1x128xf32>
    tpu.vector_store %arg3[%c0_5, %c0_6, %c0_7], %12 {strides = array<i32>} : memref<1x3x128xf32, #tpu.memory_space<vmem>>, vector<1x1x128xf32>,
    %c0_8 = arith.constant 0 : index
    %c1 = arith.constant 1 : index
    %c0_9 = arith.constant 0 : index
    %13 = vector.load %arg3[%c0_8, %c1, %c0_9] : memref<1x3x128xf32, #tpu.memory_space<vmem>>, vector<1x1x128xf32>
    %14 = vector.shape_cast %13 : vector<1x1x128xf32> to vector<128xf32>
    %cst_10 = arith.constant dense<0.000000e+00> : vector<128xf32>
    %15 = vector.multi_reduction <add>, %4, %cst_10 [0] : vector<32x128xf32> to vector<128xf32>
    %16 = arith.addf %14, %15 : vector<128xf32>
    %c0_11 = arith.constant 0 : index
    %c1_12 = arith.constant 1 : index
    %c0_13 = arith.constant 0 : index
    %17 = vector.load %arg3[%c0_11, %c1_12, %c0_13] : memref<1x3x128xf32, #tpu.memory_space<vmem>>, vector<1x1x128xf32>
    %18 = vector.shape_cast %17 : vector<1x1x128xf32> to vector<128xf32>
    %19 = vector.shape_cast %16 : vector<128xf32> to vector<1x1x128xf32>
    tpu.vector_store %arg3[%c0_11, %c1_12, %c0_13], %19 {strides = array<i32>} : memref<1x3x128xf32, #tpu.memory_space<vmem>>, vector<1x1x128xf32>,
    %c0_14 = arith.constant 0 : index
    %c2 = arith.constant 2 : index
    %c0_15 = arith.constant 0 : index
    %20 = vector.load %arg3[%c0_14, %c2, %c0_15] : memref<1x3x128xf32, #tpu.memory_space<vmem>>, vector<1x1x128xf32>
    %21 = vector.shape_cast %20 : vector<1x1x128xf32> to vector<128xf32>
    %22 = arith.mulf %3, %3 : vector<32x128xf32>
    %cst_16 = arith.constant dense<0.000000e+00> : vector<128xf32>
    %23 = vector.multi_reduction <add>, %22, %cst_16 [0] : vector<32x128xf32> to vector<128xf32>
    %24 = arith.addf %21, %23 : vector<128xf32>
    %c0_17 = arith.constant 0 : index
    %c2_18 = arith.constant 2 : index
    %c0_19 = arith.constant 0 : index
    %25 = vector.load %arg3[%c0_17, %c2_18, %c0_19] : memref<1x3x128xf32, #tpu.memory_space<vmem>>, vector<1x1x128xf32>
    %26 = vector.shape_cast %25 : vector<1x1x128xf32> to vector<128xf32>
    %27 = vector.shape_cast %24 : vector<128xf32> to vector<1x1x128xf32>
    tpu.vector_store %arg3[%c0_17, %c2_18, %c0_19], %27 {strides = array<i32>} : memref<1x3x128xf32, #tpu.memory_space<vmem>>, vector<1x1x128xf32>,
    return
  }
  func.func @transform_0(%arg0: i32, %arg1: i32) -> (i32, i32) {
    %c1_i32 = arith.constant 1 : i32
    %0 = arith.muli %arg0, %c1_i32 : i32
    %1 = arith.addi %0, %arg1 : i32
    %c0_i32 = arith.constant 0 : i32
    %c0_i32_0 = arith.constant 0 : i32
    return %1, %c0_i32 : i32, i32
  }
  func.func @transform_1(%arg0: i32, %arg1: i32) -> (i32, i32, i32) {
    %c0_i32 = arith.constant 0 : i32
    %c0_i32_0 = arith.constant 0 : i32
    %c0_i32_1 = arith.constant 0 : i32
    return %arg0, %c0_i32, %c0_i32_0 : i32, i32, i32
  }
}

</mosaic_0001>

<llo_original>
// kernel: scattering_op.2
$region0: #{scattering_op.2}
  #allocation0 [shape = 'u32[]', space=smem, size = 0x4, offset = 0x4, fixed_abs, tag = 'smem constant byte address 0x4 - core index']
  #allocation1 [shape = 'u32[144,128]{1,0:T(1,128)}', space=vmem, size = 0x12000, scoped, tag = 'internal scratch']
  %s0 = inlined_call_operand.vmem [shape: f32[32,128], index: 0, kind: input, shape index: {}]
  %s1 = inlined_call_operand.vmem [shape: f32[1,3,128], index: 1, kind: output, shape index: {}]
  %s2 = sld [smem:[#allocation0]]
  $region18: #{scattering_op.2} parent=0
    _
  %s4 = ssub.s32 1, %s2
  %s5 = scalar_select 0, %s4, %s2
  // Predicated region
  $region2: #{scattering_op.2} parent=0 // pred_check
    _
  $region3: #{scattering_op.2} parent=0 // pred_check_branch
    %7 = sbr.rel (0) target = $region5
  $region4: #{scattering_op.2} parent=0 // pred_region
    %s8 = sadd.s32 0, 0
    %s9 = smul.u32 4, %s8
    %p10 = scmp.lt.s32.totalorder %s9, 3
    %s11 = scalar_select %p10, %s9, 3
    %s12 = smul.addr %s11, 8
    %s13 = scalar_lea.vmem %s0, %s12
    %s14 = sadd.s32 0, 0
    %s15 = smul.u32 4, %s14
  $region5: #{scattering_op.2} parent=0 // pred_fallthru
    _
  %s16 = sadd.s32 0, 0
  %s17 = smul.u32 4, %s16
  %p18 = scmp.lt.s32.totalorder %s17, 3
  %s19 = scalar_select %p18, %s17, 3
  %s20 = smul.addr %s19, 8
  %s21 = scalar_lea.vmem %s0, %s20
  %s22 = sadd.s32 0, 0
  %s23 = smul.u32 4, %s22
  %p24 = scmp.lt.s32.totalorder %s23, 3
  %s25 = scalar_select %p24, %s23, 3
  %s26 = smul.addr %s25, 8
  %s27 = scalar_lea.vmem %s0, %s26
  %s28 = sadd.s32 0, 0
  %s29 = smul.u32 4, %s28
  %p30 = scmp.eq.s32.totalorder 0, 0
  // Predicated region
  $region6: #{scattering_op.2} parent=0 // pred_check
    %p31 = pneg %p30
  $region7: #{scattering_op.2} parent=0 // pred_check_branch
    %33 = sbr.rel (%p31) target = $region9
  $region8: #{scattering_op.2} parent=0 // pred_region
    %34 = vst [vmem:[%s1] sm:$0x7] 0.0
  $region9: #{scattering_op.2} parent=0 // pred_fallthru
    _
  %v35 = vld [vmem:[%s27] sm:$0xff]
  %v36 = vld [vmem:[%s27 + $0x8] sm:$0xff]
  %v37 = vld [vmem:[%s27 + $0x10] sm:$0xff]
  %v38 = vld [vmem:[%s27 + $0x18] sm:$0xff]
  %v39 = vand.u32 2147483647, %v35
  %v40 = vand.u32 2147483647, %v36
  %v41 = vand.u32 2147483647, %v37
  %v42 = vand.u32 2147483647, %v38
  %v43 = vld [vmem:[%s1] sm:$0x1]
  %v44 = vrsqrt.pop %v39
  %v45 = vmul.f32 %v39, %v44
  %vm46 = vcmp.eq.f32.partialorder %v39, inf
  %v47 = vsel %vm46, %v39, %v45
  %vm48 = vcmp.eq.f32.partialorder %v39, 0.0
  %v49 = vand.u32 %v39, 2147483648
  %v50 = vsel %vm48, %v49, %v47
  %v51 = vrsqrt.pop %v40
  %v52 = vmul.f32 %v40, %v51
  %vm53 = vcmp.eq.f32.partialorder %v40, inf
  %v54 = vsel %vm53, %v40, %v52
  %vm55 = vcmp.eq.f32.partialorder %v40, 0.0
  %v56 = vand.u32 %v40, 2147483648
  %v57 = vsel %vm55, %v56, %v54
  %v58 = vrsqrt.pop %v41
  %v59 = vmul.f32 %v41, %v58
  %vm60 = vcmp.eq.f32.partialorder %v41, inf
  %v61 = vsel %vm60, %v41, %v59
  %vm62 = vcmp.eq.f32.partialorder %v41, 0.0
  %v63 = vand.u32 %v41, 2147483648
  %v64 = vsel %vm62, %v63, %v61
  %v65 = vrsqrt.pop %v42
  %v66 = vmul.f32 %v42, %v65
  %vm67 = vcmp.eq.f32.partialorder %v42, inf
  %v68 = vsel %vm67, %v42, %v66
  %vm69 = vcmp.eq.f32.partialorder %v42, 0.0
  %v70 = vand.u32 %v42, 2147483648
  %v71 = vsel %vm69, %v70, %v68
  %v72 = vadd.f32 %v50, %v57
  %v73 = vadd.f32 %v72, %v64
  %v74 = vadd.f32 %v73, %v71
  %v75 = vrot.slane %v74, 4
  %v76 = vadd.f32 %v74, %v75
  %v77 = vrot.slane %v76, 2
  %v78 = vadd.f32 %v76, %v77
  %v79 = vrot.slane %v78, 1
  %v80 = vadd.f32 %v78, %v79
  %v81 = vadd.f32 %v43, %v80
  %82 = vst [vmem:[%s1] sm:$0x1] %v81
  %v83 = vld [vmem:[%s1 + $0x1] sm:$0x1]
  %v84 = vadd.f32 %v39, %v40
  %v85 = vadd.f32 %v84, %v41
  %v86 = vadd.f32 %v85, %v42
  %v87 = vrot.slane %v86, 4
  %v88 = vadd.f32 %v86, %v87
  %v89 = vrot.slane %v88, 2
  %v90 = vadd.f32 %v88, %v89
  %v91 = vrot.slane %v90, 1
  %v92 = vadd.f32 %v90, %v91
  %v93 = vadd.f32 %v83, %v92
  %94 = vst [vmem:[%s1 + $0x1] sm:$0x1] %v93
  %v95 = vld [vmem:[%s1 + $0x2] sm:$0x1]
  %v96 = vmul.f32 %v35, %v35
  %v97 = vmul.f32 %v36, %v36
  %v98 = vmul.f32 %v37, %v37
  %v99 = vmul.f32 %v38, %v38
  %v100 = vadd.f32 %v96, %v97
  %v101 = vadd.f32 %v100, %v98
  %v102 = vadd.f32 %v101, %v99
  %v103 = vrot.slane %v102, 4
  %v104 = vadd.f32 %v102, %v103
  %v105 = vrot.slane %v104, 2
  %v106 = vadd.f32 %v104, %v105
  %v107 = vrot.slane %v106, 1
  %v108 = vadd.f32 %v106, %v107
  %v109 = vadd.f32 %v95, %v108
  %110 = vst [vmem:[%s1 + $0x2] sm:$0x1] %v109
  // Predicated region
  $region10: #{scattering_op.2} parent=0 // pred_check
    _
  $region11: #{scattering_op.2} parent=0 // pred_check_branch
    %112 = sbr.rel (0) target = $region13
  $region12: #{scattering_op.2} parent=0 // pred_region
    _
  $region13: #{scattering_op.2} parent=0 // pred_fallthru
    _
  // Predicated region
  $region14: #{scattering_op.2} parent=0 // pred_check
    _
  $region15: #{scattering_op.2} parent=0 // pred_check_branch
    %114 = sbr.rel (0) target = $region17
  $region16: #{scattering_op.2} parent=0 // pred_region
    _
  $region17: #{scattering_op.2} parent=0 // pred_fallthru
    _

// kernel: scattering_op.3
$region0: #{scattering_op.3}
  #allocation0 [shape = 'u32[]', space=smem, size = 0x4, offset = 0x4, fixed_abs, tag = 'smem constant byte address 0x4 - core index']
  #allocation1 [shape = 'u32[144,128]{1,0:T(1,128)}', space=vmem, size = 0x12000, scoped, tag = 'internal scratch']
  %s0 = inlined_call_operand.vmem [shape: bf16[4,32,128], index: 0, kind: input, shape index: {}]
  %s1 = inlined_call_operand.vmem [shape: bf16[4,32,128], index: 1, kind: input, shape index: {}]
  %s2 = inlined_call_operand.vmem [shape: f32[4,3,128], index: 2, kind: output, shape index: {}]
  %s3 = sld [smem:[#allocation0]]
  $region45: #{scattering_op.3} parent=0
    _
  %s5 = ssub.s32 1, %s3
  %s6 = scalar_select 0, %s5, %s3
  loop: start=0, step=1, limit=6
  $region2: #{scattering_op.3} parent=0 // loop_pre_header
    _
  $region3: #{scattering_op.3} parent=0 // loop_header
    %s8 = sphi 0, %s12
    %p9 = scmp.ge.s32.totalorder %s8, 6
    %s15 = sphi 0, %s27
    %s16 = sphi 0, %s23
    %s17 = sphi 0, %s15
    %s18 = sphi 0, %s16
    %s19 = sphi 0, %s17
    %s20 = sphi 0, %s18
    %s32 = sphi 0, %s34
    %s35 = sphi 0, %s32
    %s36 = sphi 0, %s35
    %s52 = sphi 0, %s36
    %s60 = sphi 0, %s62
    %s63 = sphi 0, %s60
    %s64 = sphi 0, %s63
    %s80 = sphi 0, %s64
    %s86 = sphi 0, %s88
    %s89 = sphi 0, %s86
    %s90 = sphi 0, %s89
    %s106 = sphi 0, %s90
  $region4: #{scattering_op.3} parent=0 // loop_header_branch
    %11 = sbr.rel (%p9) target = $region8
  $region5: #{scattering_op.3} parent=0 // loop_body
    %s13 = ssub.s32 %s8, 1
    %s14 = ssub.s32 %s8, 2
    %s21 = sadd.s32 1, %s16
    %p22 = scmp.ge.s32.totalorder %s21, 1
    %s23 = scalar_select %p22, 0, %s21
    %s24 = sadd.s32 1, %s15
    %s25 = scalar_select %p22, %s24, %s15
    %p26 = scmp.ge.s32.totalorder %s25, 4
    %s27 = scalar_select %p26, 0, %s25
    %s28 = ssub.s32 %s15, %s27
    %s29 = ssub.s32 %s16, %s23
    %s30 = sor.u32 %s28, %s29
    %p31 = scmp.eq.s32.totalorder %s30, 0
    %s33 = sadd.s32 %s32, 1
    %s34 = scalar_select %p31, %s32, %s33
    %p37 = pneg %p31
    %p38 = scmp.eq.s32.totalorder %s8, 3
    %p39 = por %p37, %p38
    %p40 = scmp.ne.s32.totalorder %s32, %s35
    %p41 = scmp.eq.s32.totalorder %s8, 0
    %p42 = por %p40, %p41
    %p43 = scmp.ne.s32.totalorder %s32, %s35
    %p44 = scmp.eq.s32.totalorder %s13, 3
    %p45 = por %p43, %p44
    %p46 = scmp.ne.s32.totalorder %s35, %s36
    %p47 = scmp.eq.s32.totalorder %s13, 0
    %p48 = por %p46, %p47
    %p49 = scmp.ne.s32.totalorder %s35, %s36
    %p50 = scmp.eq.s32.totalorder %s14, 3
    %p51 = por %p49, %p50
    %p53 = scmp.ne.s32.totalorder %s36, %s52
    %p54 = scmp.eq.s32.totalorder %s14, 0
    %p55 = por %p53, %p54
    %s56 = ssub.s32 %s15, %s27
    %s57 = ssub.s32 %s16, %s23
    %s58 = sor.u32 %s56, %s57
    %p59 = scmp.eq.s32.totalorder %s58, 0
    %s61 = sadd.s32 %s60, 1
    %s62 = scalar_select %p59, %s60, %s61
    %p65 = pneg %p59
    %p66 = scmp.eq.s32.totalorder %s8, 3
    %p67 = por %p65, %p66
    %p68 = scmp.ne.s32.totalorder %s60, %s63
    %p69 = scmp.eq.s32.totalorder %s8, 0
    %p70 = por %p68, %p69
    %p71 = scmp.ne.s32.totalorder %s60, %s63
    %p72 = scmp.eq.s32.totalorder %s13, 3
    %p73 = por %p71, %p72
    %p74 = scmp.ne.s32.totalorder %s63, %s64
    %p75 = scmp.eq.s32.totalorder %s13, 0
    %p76 = por %p74, %p75
    %p77 = scmp.ne.s32.totalorder %s63, %s64
    %p78 = scmp.eq.s32.totalorder %s14, 3
    %p79 = por %p77, %p78
    %p81 = scmp.ne.s32.totalorder %s64, %s80
    %p82 = scmp.eq.s32.totalorder %s14, 0
    %p83 = por %p81, %p82
    %s84 = ssub.s32 %s15, %s27
    %p85 = scmp.eq.s32.totalorder %s84, 0
    %s87 = sadd.s32 %s86, 1
    %s88 = scalar_select %p85, %s86, %s87
    %p91 = pneg %p85
    %p92 = scmp.eq.s32.totalorder %s8, 3
    %p93 = por %p91, %p92
    %p94 = scmp.ne.s32.totalorder %s86, %s89
    %p95 = scmp.eq.s32.totalorder %s8, 0
    %p96 = por %p94, %p95
    %p97 = scmp.ne.s32.totalorder %s86, %s89
    %p98 = scmp.eq.s32.totalorder %s13, 3
    %p99 = por %p97, %p98
    %p100 = scmp.ne.s32.totalorder %s89, %s90
    %p101 = scmp.eq.s32.totalorder %s13, 0
    %p102 = por %p100, %p101
    %p103 = scmp.ne.s32.totalorder %s89, %s90
    %p104 = scmp.eq.s32.totalorder %s14, 3
    %p105 = por %p103, %p104
    %p107 = scmp.ne.s32.totalorder %s90, %s106
    %p108 = scmp.eq.s32.totalorder %s14, 0
    %p109 = por %p107, %p108
    %p110 = scmp.le.s32.totalorder 1, %s8
    %p111 = scmp.lt.s32.totalorder %s8, 5
    %p112 = pnand %p110, %p111
    %p113 = pneg %p112
    // Predicated region
    $region9: #{scattering_op.3} parent=5 // pred_check
      _
    $region10: #{scattering_op.3} parent=5 // pred_check_branch
      %115 = sbr.rel (%p112) target = $region12
    $region11: #{scattering_op.3} parent=5 // pred_region
      %s116 = ssub.s32 %s8, 1
    $region12: #{scattering_op.3} parent=5 // pred_fallthru
      _
    %p117 = scmp.lt.s32.totalorder %s8, 4
    // Predicated region
    $region13: #{scattering_op.3} parent=5 // pred_check
      %p118 = pneg %p117
    $region14: #{scattering_op.3} parent=5 // pred_check_branch
      %120 = sbr.rel (%p118) target = $region16
    $region15: #{scattering_op.3} parent=5 // pred_region
      // Predicated region
      $region17: #{scattering_op.3} parent=15 // pred_check
        %p121 = pneg %p42
      $region18: #{scattering_op.3} parent=15 // pred_check_branch
        %123 = sbr.rel (%p121) target = $region20
      $region19: #{scattering_op.3} parent=15 // pred_region
        %s124 = smul.u32 4, %s16
        %p125 = scmp.lt.s32.totalorder %s15, 3
        %s126 = scalar_select %p125, %s15, 3
        %p127 = scmp.lt.s32.totalorder %s124, 3
        %s128 = scalar_select %p127, %s124, 3
        %s129 = smul.addr %s126, 4
        %s130 = sadd.s32 %s128, %s129
        %s131 = smul.addr %s130, 4
        %s132 = scalar_lea.vmem %s0, %s131
        %s133 = smul.u32 4, %s16
      $region20: #{scattering_op.3} parent=15 // pred_fallthru
        _
      // Predicated region
      $region21: #{scattering_op.3} parent=15 // pred_check
        %p134 = pneg %p70
      $region22: #{scattering_op.3} parent=15 // pred_check_branch
        %136 = sbr.rel (%p134) target = $region24
      $region23: #{scattering_op.3} parent=15 // pred_region
        %s137 = smul.u32 4, %s16
        %p138 = scmp.lt.s32.totalorder %s15, 3
        %s139 = scalar_select %p138, %s15, 3
        %p140 = scmp.lt.s32.totalorder %s137, 3
        %s141 = scalar_select %p140, %s137, 3
        %s142 = smul.addr %s139, 4
        %s143 = sadd.s32 %s141, %s142
        %s144 = smul.addr %s143, 4
        %s145 = scalar_lea.vmem %s1, %s144
        %s146 = smul.u32 4, %s16
      $region24: #{scattering_op.3} parent=15 // pred_fallthru
        _
    $region16: #{scattering_op.3} parent=5 // pred_fallthru
      _
    %p147 = scmp.le.s32.totalorder 1, %s8
    %p148 = scmp.lt.s32.totalorder %s8, 5
    %p149 = pnand %p147, %p148
    %p150 = pneg %p149
    // Predicated region
    $region25: #{scattering_op.3} parent=5 // pred_check
      _
    $region26: #{scattering_op.3} parent=5 // pred_check_branch
      %152 = sbr.rel (%p149) target = $region28
    $region27: #{scattering_op.3} parent=5 // pred_region
      %s153 = ssub.s32 %s8, 1
      %s154 = smul.u32 4, %s18
      %p155 = scmp.lt.s32.totalorder %s17, 3
      %s156 = scalar_select %p155, %s17, 3
      %p157 = scmp.lt.s32.totalorder %s154, 3
      %s158 = scalar_select %p157, %s154, 3
      %s159 = smul.addr %s156, 4
      %s160 = sadd.s32 %s158, %s159
      %s161 = smul.addr %s160, 4
      %s162 = scalar_lea.vmem %s0, %s161
      %p163 = pneg %p48
      %p164 = pneg %p45
      %s165 = smul.u32 4, %s18
      %p166 = scmp.lt.s32.totalorder %s17, 3
      %s167 = scalar_select %p166, %s17, 3
      %p168 = scmp.lt.s32.totalorder %s165, 3
      %s169 = scalar_select %p168, %s165, 3
      %s170 = smul.addr %s167, 4
      %s171 = sadd.s32 %s169, %s170
      %s172 = smul.addr %s171, 4
      %s173 = scalar_lea.vmem %s1, %s172
      %p174 = pneg %p76
      %p175 = pneg %p73
      %p176 = pneg %p102
      %p177 = pneg %p99
      %p178 = scmp.lt.s32.totalorder %s17, 3
      %s179 = scalar_select %p178, %s17, 3
      %s180 = smul.addr %s179, 4
      %s181 = scalar_lea.vmem %s2, %s180
      %s182 = smul.u32 4, %s18
      %p183 = scmp.lt.s32.totalorder %s17, 3
      %s184 = scalar_select %p183, %s17, 3
      %p185 = scmp.lt.s32.totalorder %s182, 3
      %s186 = scalar_select %p185, %s182, 3
      %s187 = smul.addr %s184, 4
      %s188 = sadd.s32 %s186, %s187
      %s189 = smul.addr %s188, 4
      %s190 = scalar_lea.vmem %s0, %s189
      %s191 = smul.u32 4, %s18
      %s192 = smul.u32 4, %s18
      %p193 = scmp.lt.s32.totalorder %s17, 3
      %s194 = scalar_select %p193, %s17, 3
      %p195 = scmp.lt.s32.totalorder %s192, 3
      %s196 = scalar_select %p195, %s192, 3
      %s197 = smul.addr %s194, 4
      %s198 = sadd.s32 %s196, %s197
      %s199 = smul.addr %s198, 4
      %s200 = scalar_lea.vmem %s1, %s199
      %s201 = smul.u32 4, %s18
      %p202 = scmp.lt.s32.totalorder %s17, 3
      %s203 = scalar_select %p202, %s17, 3
      %s204 = smul.addr %s203, 4
      %s205 = scalar_lea.vmem %s2, %s204
      %p206 = scmp.eq.s32.totalorder %s18, 0
      // Predicated region
      $region29: #{scattering_op.3} parent=27 // pred_check
        %p207 = pneg %p206
      $region30: #{scattering_op.3} parent=27 // pred_check_branch
        %209 = sbr.rel (%p207) target = $region32
      $region31: #{scattering_op.3} parent=27 // pred_region
        %210 = vst [vmem:[%s205] sm:$0x7] 0.0
      $region32: #{scattering_op.3} parent=27 // pred_fallthru
        _
      %v211 = vld [vmem:[%s190] sm:$0xf]
      %v212 = vld [vmem:[%s190 + $0x4] sm:$0xf]
      %v213 = vld [vmem:[%s190 + $0x8] sm:$0xf]
      %v214 = vld [vmem:[%s190 + $0xc] sm:$0xf]
      %v215 = vunpack.c.l.bf16 %v211
      %v216 = vunpack.c.l.bf16 %v212
      %v217 = vunpack.c.l.bf16 %v213
      %v218 = vunpack.c.l.bf16 %v214
      %v219 = vld [vmem:[%s200] sm:$0xf]
      %v220 = vld [vmem:[%s200 + $0x4] sm:$0xf]
      %v221 = vld [vmem:[%s200 + $0x8] sm:$0xf]
      %v222 = vld [vmem:[%s200 + $0xc] sm:$0xf]
      %v223 = vunpack.c.l.bf16 %v219
      %v224 = vunpack.c.l.bf16 %v220
      %v225 = vunpack.c.l.bf16 %v221
      %v226 = vunpack.c.l.bf16 %v222
      %v227 = vmul.f32 %v215, %v215
      %v228 = vmul.f32 %v216, %v216
      %v229 = vmul.f32 %v217, %v217
      %v230 = vmul.f32 %v218, %v218
      %v231 = vmul.f32 %v223, %v223
      %v232 = vmul.f32 %v224, %v224
      %v233 = vmul.f32 %v225, %v225
      %v234 = vmul.f32 %v226, %v226
      %v235 = vadd.f32 %v227, %v231
      %v236 = vadd.f32 %v228, %v232
      %v237 = vadd.f32 %v229, %v233
      %v238 = vadd.f32 %v230, %v234
      %v239 = vrsqrt.pop %v235
      %v240 = vmul.f32 %v235, %v239
      %vm241 = vcmp.eq.f32.partialorder %v235, inf
      %v242 = vsel %vm241, %v235, %v240
      %vm243 = vcmp.eq.f32.partialorder %v235, 0.0
      %v244 = vand.u32 %v235, 2147483648
      %v245 = vsel %vm243, %v244, %v242
      %v246 = vrsqrt.pop %v236
      %v247 = vmul.f32 %v236, %v246
      %vm248 = vcmp.eq.f32.partialorder %v236, inf
      %v249 = vsel %vm248, %v236, %v247
      %vm250 = vcmp.eq.f32.partialorder %v236, 0.0
      %v251 = vand.u32 %v236, 2147483648
      %v252 = vsel %vm250, %v251, %v249
      %v253 = vrsqrt.pop %v237
      %v254 = vmul.f32 %v237, %v253
      %vm255 = vcmp.eq.f32.partialorder %v237, inf
      %v256 = vsel %vm255, %v237, %v254
      %vm257 = vcmp.eq.f32.partialorder %v237, 0.0
      %v258 = vand.u32 %v237, 2147483648
      %v259 = vsel %vm257, %v258, %v256
      %v260 = vrsqrt.pop %v238
      %v261 = vmul.f32 %v238, %v260
      %vm262 = vcmp.eq.f32.partialorder %v238, inf
      %v263 = vsel %vm262, %v238, %v261
      %vm264 = vcmp.eq.f32.partialorder %v238, 0.0
      %v265 = vand.u32 %v238, 2147483648
      %v266 = vsel %vm264, %v265, %v263
      %v267 = vrsqrt.pop %v245
      %v268 = vmul.f32 %v245, %v267
      %vm269 = vcmp.eq.f32.partialorder %v245, inf
      %v270 = vsel %vm269, %v245, %v268
      %vm271 = vcmp.eq.f32.partialorder %v245, 0.0
      %v272 = vand.u32 %v245, 2147483648
      %v273 = vsel %vm271, %v272, %v270
      %v274 = vrsqrt.pop %v252
      %v275 = vmul.f32 %v252, %v274
      %vm276 = vcmp.eq.f32.partialorder %v252, inf
      %v277 = vsel %vm276, %v252, %v275
      %vm278 = vcmp.eq.f32.partialorder %v252, 0.0
      %v279 = vand.u32 %v252, 2147483648
      %v280 = vsel %vm278, %v279, %v277
      %v281 = vrsqrt.pop %v259
      %v282 = vmul.f32 %v259, %v281
      %vm283 = vcmp.eq.f32.partialorder %v259, inf
      %v284 = vsel %vm283, %v259, %v282
      %vm285 = vcmp.eq.f32.partialorder %v259, 0.0
      %v286 = vand.u32 %v259, 2147483648
      %v287 = vsel %vm285, %v286, %v284
      %v288 = vrsqrt.pop %v266
      %v289 = vmul.f32 %v266, %v288
      %vm290 = vcmp.eq.f32.partialorder %v266, inf
      %v291 = vsel %vm290, %v266, %v289
      %vm292 = vcmp.eq.f32.partialorder %v266, 0.0
      %v293 = vand.u32 %v266, 2147483648
      %v294 = vsel %vm292, %v293, %v291
      %v295 = vld [vmem:[%s205] sm:$0x1]
      %v296 = vadd.f32 %v273, %v280
      %v297 = vadd.f32 %v296, %v287
      %v298 = vadd.f32 %v297, %v294
      %v299 = vrot.slane %v298, 4
      %v300 = vadd.f32 %v298, %v299
      %v301 = vrot.slane %v300, 2
      %v302 = vadd.f32 %v300, %v301
      %v303 = vrot.slane %v302, 1
      %v304 = vadd.f32 %v302, %v303
      %v305 = vadd.f32 %v295, %v304
      %306 = vst [vmem:[%s205] sm:$0x1] %v305
      %v307 = vld [vmem:[%s205 + $0x1] sm:$0x1]
      %v308 = vadd.f32 %v245, %v252
      %v309 = vadd.f32 %v308, %v259
      %v310 = vadd.f32 %v309, %v266
      %v311 = vrot.slane %v310, 4
      %v312 = vadd.f32 %v310, %v311
      %v313 = vrot.slane %v312, 2
      %v314 = vadd.f32 %v312, %v313
      %v315 = vrot.slane %v314, 1
      %v316 = vadd.f32 %v314, %v315
      %v317 = vadd.f32 %v307, %v316
      %318 = vst [vmem:[%s205 + $0x1] sm:$0x1] %v317
      %v319 = vld [vmem:[%s205 + $0x2] sm:$0x1]
      %v320 = vadd.f32 %v235, %v236
      %v321 = vadd.f32 %v320, %v237
      %v322 = vadd.f32 %v321, %v238
      %v323 = vrot.slane %v322, 4
      %v324 = vadd.f32 %v322, %v323
      %v325 = vrot.slane %v324, 2
      %v326 = vadd.f32 %v324, %v325
      %v327 = vrot.slane %v326, 1
      %v328 = vadd.f32 %v326, %v327
      %v329 = vadd.f32 %v319, %v328
      %330 = vst [vmem:[%s205 + $0x2] sm:$0x1] %v329
      %p331 = scmp.lt.s32.totalorder %s17, 3
      %s332 = scalar_select %p331, %s17, 3
      %s333 = smul.addr %s332, 4
      %s334 = scalar_lea.vmem %s2, %s333
      // Predicated region
      $region33: #{scattering_op.3} parent=27 // pred_check
        %p335 = pneg %p99
      $region34: #{scattering_op.3} parent=27 // pred_check_branch
        %337 = sbr.rel (%p335) target = $region36
      $region35: #{scattering_op.3} parent=27 // pred_region
        _
      $region36: #{scattering_op.3} parent=27 // pred_fallthru
        _
    $region28: #{scattering_op.3} parent=5 // pred_fallthru
      _
    %p338 = scmp.le.s32.totalorder 2, %s8
    // Predicated region
    $region37: #{scattering_op.3} parent=5 // pred_check
      %p339 = pneg %p338
    $region38: #{scattering_op.3} parent=5 // pred_check_branch
      %341 = sbr.rel (%p339) target = $region40
    $region39: #{scattering_op.3} parent=5 // pred_region
      %s342 = ssub.s32 %s8, 2
      // Predicated region
      $region41: #{scattering_op.3} parent=39 // pred_check
        %p343 = pneg %p105
      $region42: #{scattering_op.3} parent=39 // pred_check_branch
        %345 = sbr.rel (%p343) target = $region44
      $region43: #{scattering_op.3} parent=39 // pred_region
        %p346 = scmp.lt.s32.totalorder %s19, 3
        %s347 = scalar_select %p346, %s19, 3
        %s348 = smul.addr %s347, 4
        %s349 = scalar_lea.vmem %s2, %s348
      $region44: #{scattering_op.3} parent=39 // pred_fallthru
        _
    $region40: #{scattering_op.3} parent=5 // pred_fallthru
      _
  $region6: #{scattering_op.3} parent=0 // loop_footer
    %s12 = sadd.s32 1, %s8
  $region7: #{scattering_op.3} parent=0 // loop_footer_branch
    %7 = sbr.rel target = $region3
  $region8: #{scattering_op.3} parent=0 // loop_exit
    _

</llo_original>
